<compile_context>
chip_gen: v7x
topology: tpu7x:2x2x1
jax: 0.10.0
libtpu: 0.0.40
codegen_flags: <defaults>
</compile_context>

<pallas_src>
import functools
import math

import jax
import jax.numpy as jnp
from jax.experimental import pallas as pl
from jax.experimental.pallas import tpu as pltpu


def _round_up(x, m):
    return (x + m - 1) // m * m


def _vmem_capacity_bytes():
    # Per-TensorCore VMEM: 128 MiB on v5e/v6e, 64 MiB on v7x.
    try:
        return int(pltpu.get_tpu_info().vmem_capacity_bytes)
    except Exception:  # off-TPU / older runtime: assume the smallest (v7x) part
        return 64 << 20


# ---------------------------------------------------------------------------
# Kernel: one (B, TC) tile of circle-loss logits, with BOTH L2 normalizations
# fused so the raw weight is streamed from HBM exactly once per forward.
# ---------------------------------------------------------------------------
def _circle_kernel(feat_ref, w_ref, tgt_ref, out_ref, *, scale, margin, matmul_dtype):
    f = feat_ref[...].astype(jnp.float32)                    # (B, D)
    w = w_ref[...].astype(jnp.float32)                       # (TC, D) raw weight tile

    # F.normalize(...): rsqrt (EUP slot) + multiply; == x / max(||x||, 1e-12) for all
    # non-degenerate rows (documented, intentional deviation for near-zero rows).
    f_inv = jax.lax.rsqrt(jnp.sum(f * f, axis=-1, keepdims=True) + 1e-24)
    w_inv = jax.lax.rsqrt(jnp.sum(w * w, axis=-1, keepdims=True) + 1e-24)
    # Feature normalization is recomputed per class tile on purpose: a
    # @pl.when(program_id==0) scratch hoist is unsafe under megacore sharding of the
    # "parallel" class axis (core 1 never executes step 0), and the (B, D) work rides
    # in VPU/EUP slack next to the weight-tile normalization anyway.
    f_n = (f * f_inv).astype(matmul_dtype)
    w_n = (w * w_inv).astype(matmul_dtype)

    # sim = f_n @ w_n.T as a last-dim contraction (no in-VMEM weight transpose).
    sim = jax.lax.dot_general(
        f_n, w_n,
        dimension_numbers=(((1,), (1,)), ((), ())),
        preferred_element_type=jnp.float32)                  # (B, TC) f32

    # Circle-loss margins (detach is a no-op in this forward-only computation).
    alpha_p = jnp.maximum(-sim + 1.0 + margin, 0.0)
    alpha_n = jnp.maximum(sim + margin, 0.0)
    s_p = scale * alpha_p * (sim - (1.0 - margin))
    s_n = scale * alpha_n * (sim - margin)

    # One-hot combine as a single select against class ids.
    B, TC = out_ref.shape
    j = pl.program_id(0)
    class_ids = jax.lax.broadcasted_iota(jnp.int32, (B, TC), 1) + j * TC
    out_ref[...] = jnp.where(class_ids == tgt_ref[...], s_p, s_n)


# ---------------------------------------------------------------------------
# Wrapper
# ---------------------------------------------------------------------------
def circle_forward(features, weight, targets, *, scale, margin,
                   matmul_dtype=jnp.float32, class_tile=None,
                   weight_buffer_count=None, vmem_budget_bytes=None):
    """Circle head forward.

    matmul_dtype=jnp.bfloat16 reduces MXU passes at ~1e-3 relative cost on the
    similarities (the raw f32 weight is streamed once either way in this fused
    training path); keep the f32 default for bit-faithful logits.
    """
    B, D = features.shape
    C, D2 = weight.shape
    assert D == D2
    targets2d = targets.reshape(B, 1).astype(jnp.int32)

    capacity = _vmem_capacity_bytes()
    tile_budget = capacity // 4 if vmem_budget_bytes is None else vmem_budget_bytes
    w_bpe = weight.dtype.itemsize

    # VMEM footprint model. Features/targets have a constant block index and are
    # counted once (not double-counted as streamed operands).
    resident = B * D * 4 + B * 4

    def tile_need(t, wbuf):
        return (wbuf * t * D * w_bpe      # streamed raw-weight buffers
                + 2 * t * D * 4           # in-kernel f32 / normalized weight temps
                + 2 * B * t * 4           # double-buffered output tile
                + 6 * B * t * 4           # sim / alpha / s_p / s_n temporaries
                + 2 * B * D * 4)          # normalized-feature temporaries

    # Lane-dense class tile; cap so there are always >= 2 grid steps, so the
    # "parallel" class axis can shard across v7x's two TensorCores.
    c128 = _round_up(C, 128)
    max_tc = max(128, c128 // 2) if c128 >= 256 else 128
    if class_tile is None:
        tc = 128
        while tc * 2 <= max_tc and tile_need(tc * 2, 2) + resident <= tile_budget:
            tc *= 2
        class_tile = tc
    tc = class_tile
    n_tiles = (C + tc - 1) // tc

    # Optional deeper pipelining of the only streamed operand when grid steps are
    # short; stay at the default double-buffering whenever VMEM is tight.
    if weight_buffer_count is None:
        weight_buffer_count = 3 if (
            n_tiles >= 4 and tile_need(tc, 3) + resident <= tile_budget) else 2
    if weight_buffer_count == 2:
        w_spec = pl.BlockSpec((tc, D), lambda j: (j, 0))
    else:
        w_spec = pl.BlockSpec((tc, D), lambda j: (j, 0),
                              pipeline_mode=pl.Buffered(weight_buffer_count))

    need = tile_need(tc, weight_buffer_count) + resident
    vmem_limit = int(min(max(2 * need, 32 << 20), capacity // 2))
    vmem_limit = max(vmem_limit, min(need + (4 << 20), int(capacity * 0.9)))

    # TODO(synk): for production batch sizes add a batch grid axis *inside* the class
    # axis (weight index_map independent of it) so each weight tile stays resident
    # across all B-tiles; size the B tile toward the MXU (128 on v5e, 256 on v6e/v7x).
    # TODO(synk): for frozen/eval weights reused across many calls, cache an
    # L2-normalized bf16 (fp8 on v7x) copy of the weight and skip the in-kernel
    # weight normalization to halve the steady-state streamed bytes.
    kernel = functools.partial(_circle_kernel, scale=scale, margin=margin,
                               matmul_dtype=matmul_dtype)
    return pl.pallas_call(
        kernel,
        out_shape=jax.ShapeDtypeStruct((B, C), jnp.float32),
        grid_spec=pltpu.PrefetchScalarGridSpec(
            num_scalar_prefetch=0,
            grid=(n_tiles,),
            in_specs=[
                pl.BlockSpec((B, D), lambda j: (0, 0)),   # features (resident)
                w_spec,                                   # raw weight tile (streamed once)
                pl.BlockSpec((B, 1), lambda j: (0, 0)),   # targets (resident)
            ],
            out_specs=pl.BlockSpec((B, tc), lambda j: (0, j)),
        ),
        compiler_params=pltpu.CompilerParams(
            dimension_semantics=("parallel",),
            vmem_limit_bytes=vmem_limit),
    )(features, weight, targets2d)


if __name__ == "__main__":
    # Config analogue: NUM_CLASSES, SCALE, MARGIN
    batch = 8
    in_feat = 128
    num_classes = 200        # deliberately not a multiple of 128: exercises the ragged edge tile
    scale = 64.0
    margin = 0.25

    key = jax.random.PRNGKey(0)
    k_feat, k_w, k_tgt = jax.random.split(key, 3)

    features = jax.random.normal(k_feat, (batch, in_feat), dtype=jnp.float32)

    # kaiming_uniform_(weight, a=sqrt(5)) on (num_classes, in_feat):
    # bound = sqrt(6 / ((1 + a^2) * fan_in)) = 1 / sqrt(fan_in)
    bound = 1.0 / math.sqrt(in_feat)
    weight = jax.random.uniform(
        k_w, (num_classes, in_feat), dtype=jnp.float32,
        minval=-bound, maxval=bound)

    targets = jax.random.randint(k_tgt, (batch,), 0, num_classes, dtype=jnp.int32)

    out = circle_forward(features, weight, targets, scale=scale, margin=margin)
    out = jax.block_until_ready(out)

    # Pure-JAX reference check.
    f_n = features / jnp.maximum(
        jnp.linalg.norm(features, axis=-1, keepdims=True), 1e-12)
    w_n = weight / jnp.maximum(
        jnp.linalg.norm(weight, axis=-1, keepdims=True), 1e-12)
    sim = f_n @ w_n.T
    alpha_p = jax.nn.relu(-sim + 1.0 + margin)
    alpha_n = jax.nn.relu(sim + margin)
    s_p = scale * alpha_p * (sim - (1.0 - margin))
    s_n = scale * alpha_n * (sim - margin)
    onehot = jax.nn.one_hot(targets, num_classes, dtype=jnp.float32)
    ref = onehot * s_p + (1.0 - onehot) * s_n

    assert out.shape == ref.shape, f"shape mismatch {out.shape} vs {ref.shape}"
    assert jnp.allclose(out, ref, atol=1e-4, rtol=1e-4), "mismatch vs reference"
    print("KERNEL_OK")
</pallas_src>

<mosaic_0001>
module attributes {stable_mosaic.version = 11 : i64} {
  func.func @_circle_kernel(%arg0: i32, %arg1: memref<8x128xf32, #tpu.memory_space<vmem>>, %arg2: memref<128x128xf32, #tpu.memory_space<vmem>>, %arg3: memref<8x1xi32, #tpu.memory_space<vmem>>, %arg4: memref<8x128xf32, #tpu.memory_space<vmem>>) attributes {dimension_semantics = [#tpu.dimension_semantics<parallel>], iteration_bounds = array<i64: 2>, scalar_prefetch = 0 : i64, scratch_operands = 0 : i64, tpu.core_type = #tpu.core_type<tc>, window_params = [{pipeline_mode = #tpu.pipeline_mode<synchronous>, transform_indices = @transform_0, window_bounds = array<i64: 8, 128>}, {transform_indices = @transform_1, window_bounds = array<i64: 128, 128>}, {pipeline_mode = #tpu.pipeline_mode<synchronous>, transform_indices = @transform_2, window_bounds = array<i64: 8, 1>}, {transform_indices = @transform_3, window_bounds = array<i64: 8, 128>}]} {
    %c0 = arith.constant 0 : index
    %c0_0 = arith.constant 0 : index
    %0 = vector.load %arg1[%c0, %c0_0] : memref<8x128xf32, #tpu.memory_space<vmem>>, vector<8x128xf32>
    %c0_1 = arith.constant 0 : index
    %c0_2 = arith.constant 0 : index
    %1 = vector.load %arg2[%c0_1, %c0_2] : memref<128x128xf32, #tpu.memory_space<vmem>>, vector<128x128xf32>
    %2 = arith.mulf %0, %0 : vector<8x128xf32>
    %cst = arith.constant dense<0.000000e+00> : vector<8xf32>
    %3 = vector.multi_reduction <add>, %2, %cst [1] : vector<8x128xf32> to vector<8xf32>
    %4 = vector.shape_cast %3 : vector<8xf32> to vector<8x1xf32>
    %cst_3 = arith.constant 1.000000e-24 : f32
    %5 = vector.broadcast %cst_3 : f32 to vector<8x1xf32>
    %6 = arith.addf %4, %5 : vector<8x1xf32>
    %7 = math.rsqrt %6 : vector<8x1xf32>
    %8 = arith.mulf %1, %1 : vector<128x128xf32>
    %cst_4 = arith.constant dense<0.000000e+00> : vector<128xf32>
    %9 = vector.multi_reduction <add>, %8, %cst_4 [1] : vector<128x128xf32> to vector<128xf32>
    %10 = vector.shape_cast %9 : vector<128xf32> to vector<128x1xf32>
    %cst_5 = arith.constant 1.000000e-24 : f32
    %11 = vector.broadcast %cst_5 : f32 to vector<128x1xf32>
    %12 = arith.addf %10, %11 : vector<128x1xf32>
    %13 = math.rsqrt %12 : vector<128x1xf32>
    %14 = vector.broadcast %7 : vector<8x1xf32> to vector<8x128xf32>
    %15 = arith.mulf %0, %14 : vector<8x128xf32>
    %16 = vector.broadcast %13 : vector<128x1xf32> to vector<128x128xf32>
    %17 = arith.mulf %1, %16 : vector<128x128xf32>
    %cst_6 = arith.constant dense<0.000000e+00> : vector<8x128xf32>
    %18 = tpu.matmul %15, %17, %cst_6 {dimension_numbers = #tpu.dot_dimension_numbers<[1], [1], [0], [0], [0, 0, 1, 0], [], []>} : vector<8x128xf32>, vector<128x128xf32>, vector<8x128xf32> -> vector<8x128xf32>
    %cst_7 = arith.constant 0.000000e+00 : f32
    %19 = vector.broadcast %cst_7 : f32 to vector<8x128xf32>
    %20 = arith.subf %19, %18 : vector<8x128xf32>
    %cst_8 = arith.constant 1.000000e+00 : f32
    %21 = vector.broadcast %cst_8 : f32 to vector<8x128xf32>
    %22 = arith.addf %20, %21 : vector<8x128xf32>
    %cst_9 = arith.constant 2.500000e-01 : f32
    %23 = vector.broadcast %cst_9 : f32 to vector<8x128xf32>
    %24 = arith.addf %22, %23 : vector<8x128xf32>
    %cst_10 = arith.constant 0.000000e+00 : f32
    %25 = vector.broadcast %cst_10 : f32 to vector<8x128xf32>
    %26 = arith.maximumf %24, %25 : vector<8x128xf32>
    %cst_11 = arith.constant 2.500000e-01 : f32
    %27 = vector.broadcast %cst_11 : f32 to vector<8x128xf32>
    %28 = arith.addf %18, %27 : vector<8x128xf32>
    %cst_12 = arith.constant 0.000000e+00 : f32
    %29 = vector.broadcast %cst_12 : f32 to vector<8x128xf32>
    %30 = arith.maximumf %28, %29 : vector<8x128xf32>
    %cst_13 = arith.constant 6.400000e+01 : f32
    %31 = vector.broadcast %cst_13 : f32 to vector<8x128xf32>
    %32 = arith.mulf %31, %26 : vector<8x128xf32>
    %cst_14 = arith.constant 7.500000e-01 : f32
    %33 = vector.broadcast %cst_14 : f32 to vector<8x128xf32>
    %34 = arith.subf %18, %33 : vector<8x128xf32>
    %35 = arith.mulf %32, %34 : vector<8x128xf32>
    %cst_15 = arith.constant 6.400000e+01 : f32
    %36 = vector.broadcast %cst_15 : f32 to vector<8x128xf32>
    %37 = arith.mulf %36, %30 : vector<8x128xf32>
    %cst_16 = arith.constant 2.500000e-01 : f32
    %38 = vector.broadcast %cst_16 : f32 to vector<8x128xf32>
    %39 = arith.subf %18, %38 : vector<8x128xf32>
    %40 = arith.mulf %37, %39 : vector<8x128xf32>
    %41 = tpu.iota {dimensions = array<i32: 1>} : vector<8x128xi32>
    %c128_i32 = arith.constant 128 : i32
    %42 = arith.muli %arg0, %c128_i32 : i32
    %43 = vector.broadcast %42 : i32 to vector<8x128xi32>
    %44 = arith.addi %41, %43 : vector<8x128xi32>
    %c0_17 = arith.constant 0 : index
    %c0_18 = arith.constant 0 : index
    %45 = vector.load %arg3[%c0_17, %c0_18] : memref<8x1xi32, #tpu.memory_space<vmem>>, vector<8x1xi32>
    %46 = vector.broadcast %45 : vector<8x1xi32> to vector<8x128xi32>
    %47 = arith.cmpi eq, %44, %46 : vector<8x128xi32>
    %48 = arith.select %47, %35, %40 : vector<8x128xi1>, vector<8x128xf32>
    %c0_19 = arith.constant 0 : index
    %c0_20 = arith.constant 0 : index
    %49 = vector.load %arg4[%c0_19, %c0_20] : memref<8x128xf32, #tpu.memory_space<vmem>>, vector<8x128xf32>
    tpu.vector_store %arg4[%c0_19, %c0_20], %48 {strides = array<i32>} : memref<8x128xf32, #tpu.memory_space<vmem>>, vector<8x128xf32>,
    return
  }
  func.func @transform_0(%arg0: i32) -> (i32, i32) {
    %c0_i32 = arith.constant 0 : i32
    %c0_i32_0 = arith.constant 0 : i32
    %c0_i32_1 = arith.constant 0 : i32
    return %c0_i32, %c0_i32_0 : i32, i32
  }
  func.func @transform_1(%arg0: i32) -> (i32, i32) {
    %c0_i32 = arith.constant 0 : i32
    %c0_i32_0 = arith.constant 0 : i32
    return %arg0, %c0_i32 : i32, i32
  }
  func.func @transform_2(%arg0: i32) -> (i32, i32) {
    %c0_i32 = arith.constant 0 : i32
    %c0_i32_0 = arith.constant 0 : i32
    %c0_i32_1 = arith.constant 0 : i32
    return %c0_i32, %c0_i32_0 : i32, i32
  }
  func.func @transform_3(%arg0: i32) -> (i32, i32) {
    %c0_i32 = arith.constant 0 : i32
    %c0_i32_0 = arith.constant 0 : i32
    return %c0_i32, %arg0 : i32, i32
  }
}

</mosaic_0001>

<llo_original>
// kernel: tpu_custom_call.1
$region0: #{tpu_custom_call.1}
  #allocation0 [shape = 'u32[]', space=smem, size = 0x4, offset = 0x4, fixed_abs, tag = 'smem constant byte address 0x4 - core index']
  #allocation1 [shape = 'u32[144,128]{1,0:T(1,128)}', space=vmem, size = 0x12000, scoped, tag = 'internal scratch']
  %s0 = inlined_call_operand.vmem [shape: f32[8,128], index: 0, kind: input, shape index: {}]
  %s1 = inlined_call_operand.hbm [shape: f32[200,128], index: 1, kind: input, shape index: {}]
  %s2 = inlined_call_operand.vmem [shape: s32[8,1], index: 2, kind: input, shape index: {}]
  %s3 = inlined_call_operand.hbm [shape: f32[8,200], index: 3, kind: output, shape index: {}]
  %s4 = sld [smem:[#allocation0]]
  $region49: #{tpu_custom_call.1} parent=0
    _
  %s6 = ssub.s32 1, %s4
  %s7 = scalar_select 0, %s6, %s4
  $region1: #{tpu_custom_call.1} parent=0
    #allocation2 [shape = 'u8[131072]{0}', space=vmem, size = 0x20000, scoped, tag = 'input window, operand 1']
    #allocation3 [shape = 's32[2]{0}', space=sflag, size = 0x8, scoped, tag = 'scoped memory for tpu_custom_call.1']
    #allocation4 [shape = 's32[2]{0}', space=sflag, size = 0x8, scoped, tag = 'scoped memory for tpu_custom_call.1']
    #allocation5 [shape = 'u8[8192]{0}', space=vmem, size = 0x2000, scoped, tag = 'output window, operand 0']
    %8 = vsyncpa [#allocation3], 0
    %s9 = scalar_lea.sflag [#allocation3], 1
    %10 = vsyncpa %s9, 0
    %11 = vsyncpa [#allocation4], 0
    %s12 = scalar_lea.sflag [#allocation4], 1
    %13 = vsyncpa %s12, 0
    loop: start=0, step=1, limit=4
    $region2: #{tpu_custom_call.1} parent=1 // loop_pre_header
      _
    $region3: #{tpu_custom_call.1} parent=1 // loop_header
      %s15 = sphi 0, %s19
      %p16 = scmp.ge.s32.totalorder %s15, 4
      %s23 = sphi 0, %s23
      %s25 = sphi 0, %s23
      %s26 = sphi 0, %s25
      %s40 = sphi 0, %s26
      %s46 = sphi 0, %s48
      %s49 = sphi 0, %s46
      %s50 = sphi 0, %s49
      %s66 = sphi 0, %s50
      %s70 = sphi 0, %s70
      %s72 = sphi 0, %s70
      %s73 = sphi 0, %s72
      %s87 = sphi 0, %s73
      %s93 = sphi 0, %s95
      %s96 = sphi 0, %s93
      %s97 = sphi 0, %s96
      %s113 = sphi 0, %s97
    $region4: #{tpu_custom_call.1} parent=1 // loop_header_branch
      %18 = sbr.rel (%p16) target = $region8
    $region5: #{tpu_custom_call.1} parent=1 // loop_body
      %s20 = ssub.s32 %s15, 1
      %s21 = ssub.s32 %s15, 2
      %s22 = sadd.s32 %s15, 1
      %s24 = sadd.s32 %s23, 1
      %p27 = scmp.eq.s32.totalorder %s15, 1
      %p28 = scmp.ne.s32.totalorder %s23, %s25
      %p29 = scmp.eq.s32.totalorder %s15, 0
      %p30 = por %p28, %p29
      %p31 = scmp.ne.s32.totalorder %s23, %s25
      %p32 = scmp.eq.s32.totalorder %s20, 1
      %p33 = por %p31, %p32
      %p34 = scmp.ne.s32.totalorder %s25, %s26
      %p35 = scmp.eq.s32.totalorder %s20, 0
      %p36 = por %p34, %p35
      %p37 = scmp.ne.s32.totalorder %s25, %s26
      %p38 = scmp.eq.s32.totalorder %s21, 1
      %p39 = por %p37, %p38
      %p41 = scmp.ne.s32.totalorder %s26, %s40
      %p42 = scmp.eq.s32.totalorder %s21, 0
      %p43 = por %p41, %p42
      %s44 = ssub.s32 %s15, %s22
      %p45 = scmp.eq.s32.totalorder %s44, 0
      %s47 = sadd.s32 %s46, 1
      %s48 = scalar_select %p45, %s46, %s47
      %p51 = pneg %p45
      %p52 = scmp.eq.s32.totalorder %s15, 1
      %p53 = por %p51, %p52
      %p54 = scmp.ne.s32.totalorder %s46, %s49
      %p55 = scmp.eq.s32.totalorder %s15, 0
      %p56 = por %p54, %p55
      %p57 = scmp.ne.s32.totalorder %s46, %s49
      %p58 = scmp.eq.s32.totalorder %s20, 1
      %p59 = por %p57, %p58
      %p60 = scmp.ne.s32.totalorder %s49, %s50
      %p61 = scmp.eq.s32.totalorder %s20, 0
      %p62 = por %p60, %p61
      %p63 = scmp.ne.s32.totalorder %s49, %s50
      %p64 = scmp.eq.s32.totalorder %s21, 1
      %p65 = por %p63, %p64
      %p67 = scmp.ne.s32.totalorder %s50, %s66
      %p68 = scmp.eq.s32.totalorder %s21, 0
      %p69 = por %p67, %p68
      %s71 = sadd.s32 %s70, 1
      %p74 = scmp.eq.s32.totalorder %s15, 1
      %p75 = scmp.ne.s32.totalorder %s70, %s72
      %p76 = scmp.eq.s32.totalorder %s15, 0
      %p77 = por %p75, %p76
      %p78 = scmp.ne.s32.totalorder %s70, %s72
      %p79 = scmp.eq.s32.totalorder %s20, 1
      %p80 = por %p78, %p79
      %p81 = scmp.ne.s32.totalorder %s72, %s73
      %p82 = scmp.eq.s32.totalorder %s20, 0
      %p83 = por %p81, %p82
      %p84 = scmp.ne.s32.totalorder %s72, %s73
      %p85 = scmp.eq.s32.totalorder %s21, 1
      %p86 = por %p84, %p85
      %p88 = scmp.ne.s32.totalorder %s73, %s87
      %p89 = scmp.eq.s32.totalorder %s21, 0
      %p90 = por %p88, %p89
      %s91 = ssub.s32 %s15, %s22
      %p92 = scmp.eq.s32.totalorder %s91, 0
      %s94 = sadd.s32 %s93, 1
      %s95 = scalar_select %p92, %s93, %s94
      %p98 = pneg %p92
      %p99 = scmp.eq.s32.totalorder %s15, 1
      %p100 = por %p98, %p99
      %p101 = scmp.ne.s32.totalorder %s93, %s96
      %p102 = scmp.eq.s32.totalorder %s15, 0
      %p103 = por %p101, %p102
      %p104 = scmp.ne.s32.totalorder %s93, %s96
      %p105 = scmp.eq.s32.totalorder %s20, 1
      %p106 = por %p104, %p105
      %p107 = scmp.ne.s32.totalorder %s96, %s97
      %p108 = scmp.eq.s32.totalorder %s20, 0
      %p109 = por %p107, %p108
      %p110 = scmp.ne.s32.totalorder %s96, %s97
      %p111 = scmp.eq.s32.totalorder %s21, 1
      %p112 = por %p110, %p111
      %p114 = scmp.ne.s32.totalorder %s97, %s113
      %p115 = scmp.eq.s32.totalorder %s21, 0
      %p116 = por %p114, %p115
      %p117 = scmp.le.s32.totalorder 1, %s15
      %p118 = scmp.lt.s32.totalorder %s15, 3
      %p119 = pnand %p117, %p118
      %p120 = pneg %p119
      // Predicated region
      $region9: #{tpu_custom_call.1} parent=5 // pred_check
        _
      $region10: #{tpu_custom_call.1} parent=5 // pred_check_branch
        %122 = sbr.rel (%p119) target = $region12
      $region11: #{tpu_custom_call.1} parent=5 // pred_region
        %s123 = ssub.s32 %s15, 1
        // Predicated region
        $region13: #{tpu_custom_call.1} parent=11 // pred_check
          %p124 = pneg %p36
        $region14: #{tpu_custom_call.1} parent=11 // pred_check_branch
          %126 = sbr.rel (%p124) target = $region16
        $region15: #{tpu_custom_call.1} parent=11 // pred_region
          _
        $region16: #{tpu_custom_call.1} parent=11 // pred_fallthru
          _
        // Predicated region
        $region17: #{tpu_custom_call.1} parent=11 // pred_check
          %p127 = pneg %p83
        $region18: #{tpu_custom_call.1} parent=11 // pred_check_branch
          %129 = sbr.rel (%p127) target = $region20
        $region19: #{tpu_custom_call.1} parent=11 // pred_region
          _
        $region20: #{tpu_custom_call.1} parent=11 // pred_fallthru
          _
      $region12: #{tpu_custom_call.1} parent=5 // pred_fallthru
        _
      %p130 = scmp.lt.s32.totalorder %s15, 2
      // Predicated region
      $region21: #{tpu_custom_call.1} parent=5 // pred_check
        %p131 = pneg %p130
      $region22: #{tpu_custom_call.1} parent=5 // pred_check_branch
        %133 = sbr.rel (%p131) target = $region24
      $region23: #{tpu_custom_call.1} parent=5 // pred_region
        // Predicated region
        $region25: #{tpu_custom_call.1} parent=23 // pred_check
          %p134 = pneg %p56
        $region26: #{tpu_custom_call.1} parent=23 // pred_check_branch
          %136 = sbr.rel (%p134) target = $region28
        $region27: #{tpu_custom_call.1} parent=23 // pred_region
          %s137 = sand.u32 %s46, 1
          %s138 = scalar_lea.sflag [#allocation3], %s137
          %s139 = sand.u32 %s46, 1
          %s140 = smul.addr %s139, 128
          %s141 = scalar_lea.vmem [#allocation2], %s140
          %s142 = smul.u32 16, %s15
          %s143 = ssub.s32 25, %s142
          %p144 = scmp.lt.s32.totalorder %s143, 16
          %s145 = scalar_select %p144, %s143, 16
          %s146 = smul.u32 128, %s145
          %s148 = ssub.s32 2048, %s146
          %149 = vsyncadd %s138, %s148
          %p150 = scmp.ne.s32.totalorder 0, %s146
          %s151 = smul.addr %s142, 128
          %s152 = scalar_lea.hbm %s1, %s151
          %s153 = smul.u32 8, %s145
          %s154 = sshll.u32 %s141, 4
          %s155 = int_to_ptr.vmem [resolvable:$true] %s154
          %s156 = sshll.u32 %s153, 4
          %160 = dma.hbm_to_vmem [thread:$0]  (%p150), %s152, %s156, %s155, %s138, 128, 128, 8
        $region28: #{tpu_custom_call.1} parent=23 // pred_fallthru
          _
      $region24: #{tpu_custom_call.1} parent=5 // pred_fallthru
        _
      %p161 = scmp.le.s32.totalorder 1, %s15
      %p162 = scmp.lt.s32.totalorder %s15, 3
      %p163 = pnand %p161, %p162
      %p164 = pneg %p163
      // Predicated region
      $region29: #{tpu_custom_call.1} parent=5 // pred_check
        _
      $region30: #{tpu_custom_call.1} parent=5 // pred_check_branch
        %166 = sbr.rel (%p163) target = $region32
      $region31: #{tpu_custom_call.1} parent=5 // pred_region
        %s167 = ssub.s32 %s15, 1
        %s168 = sand.u32 %s49, 1
        %s169 = scalar_lea.sflag [#allocation3], %s168
        %s170 = sand.u32 %s49, 1
        %s171 = smul.addr %s170, 128
        %s172 = scalar_lea.vmem [#allocation2], %s171
        // Predicated region
        $region33: #{tpu_custom_call.1} parent=31 // pred_check
          %p173 = pneg %p62
        $region34: #{tpu_custom_call.1} parent=31 // pred_check_branch
          %175 = sbr.rel (%p173) target = $region36
        $region35: #{tpu_custom_call.1} parent=31 // pred_region
          %176 = dma.done %s169, 2048
        $region36: #{tpu_custom_call.1} parent=31 // pred_fallthru
          _
        %p177 = pneg %p36
        %p178 = pneg %p33
        %s179 = sand.u32 %s49, 1
        %s180 = scalar_lea.sflag [#allocation3], %s179
        %s181 = sand.u32 %s49, 1
        %s182 = smul.addr %s181, 128
        %s183 = scalar_lea.vmem [#allocation2], %s182
        %p184 = pneg %p62
        %p185 = pneg %p59
        %p186 = pneg %p83
        %p187 = pneg %p80
        %p188 = pneg %p109
        %p189 = pneg %p106
        %s190 = sand.u32 %s96, 1
        %s191 = scalar_lea.sflag [#allocation4], %s190
        %s192 = sand.u32 %s96, 1
        %s193 = smul.addr %s192, 8
        %s194 = scalar_lea.vmem [#allocation5], %s193
        %s195 = smul.u32 16, %s20
        %s196 = ssub.s32 25, %s195
        %p197 = scmp.lt.s32.totalorder %s196, 16
        %s198 = scalar_select %p197, %s196, 16
        %s199 = smul.u32 128, %s198
        %v200 = vld [vmem:[%s0] sm:$0xff]
        %v201 = vld [vmem:[%s172] sm:$0xff]
        %v202 = vld [vmem:[%s172 + $0x8] sm:$0xff]
        %v203 = vld [vmem:[%s172 + $0x10] sm:$0xff]
        %v204 = vld [vmem:[%s172 + $0x18] sm:$0xff]
        %v205 = vld [vmem:[%s172 + $0x20] sm:$0xff]
        %v206 = vld [vmem:[%s172 + $0x28] sm:$0xff]
        %v207 = vld [vmem:[%s172 + $0x30] sm:$0xff]
        %v208 = vld [vmem:[%s172 + $0x38] sm:$0xff]
        %v209 = vld [vmem:[%s172 + $0x40] sm:$0xff]
        %v210 = vld [vmem:[%s172 + $0x48] sm:$0xff]
        %v211 = vld [vmem:[%s172 + $0x50] sm:$0xff]
        %v212 = vld [vmem:[%s172 + $0x58] sm:$0xff]
        %v213 = vld [vmem:[%s172 + $0x60] sm:$0xff]
        %v214 = vld [vmem:[%s172 + $0x68] sm:$0xff]
        %v215 = vld [vmem:[%s172 + $0x70] sm:$0xff]
        %v216 = vld [vmem:[%s172 + $0x78] sm:$0xff]
        %v217 = vmul.f32 %v200, %v200
        %218 = vadd.xlane.f32.xlu0 %v217
        %v219 = vpop.xlane.xlu0 %218
        %v220 = vadd.f32 %v219, 1e-24
        %v221 = vrsqrt.pop %v220
        %v222 = vmul.f32 %v201, %v201
        %v223 = vmul.f32 %v202, %v202
        %v224 = vmul.f32 %v203, %v203
        %v225 = vmul.f32 %v204, %v204
        %v226 = vmul.f32 %v205, %v205
        %v227 = vmul.f32 %v206, %v206
        %v228 = vmul.f32 %v207, %v207
        %v229 = vmul.f32 %v208, %v208
        %v230 = vmul.f32 %v209, %v209
        %v231 = vmul.f32 %v210, %v210
        %v232 = vmul.f32 %v211, %v211
        %v233 = vmul.f32 %v212, %v212
        %v234 = vmul.f32 %v213, %v213
        %v235 = vmul.f32 %v214, %v214
        %v236 = vmul.f32 %v215, %v215
        %v237 = vmul.f32 %v216, %v216
        %238 = vadd.xlane.f32.xlu0 %v222
        %v239 = vpop.xlane.xlu0 %238
        %240 = vadd.xlane.f32.xlu0 %v223
        %v241 = vpop.xlane.xlu0 %240
        %242 = vadd.xlane.f32.xlu0 %v224
        %v243 = vpop.xlane.xlu0 %242
        %244 = vadd.xlane.f32.xlu0 %v225
        %v245 = vpop.xlane.xlu0 %244
        %246 = vadd.xlane.f32.xlu0 %v226
        %v247 = vpop.xlane.xlu0 %246
        %248 = vadd.xlane.f32.xlu0 %v227
        %v249 = vpop.xlane.xlu0 %248
        %250 = vadd.xlane.f32.xlu0 %v228
        %v251 = vpop.xlane.xlu0 %250
        %252 = vadd.xlane.f32.xlu0 %v229
        %v253 = vpop.xlane.xlu0 %252
        %254 = vadd.xlane.f32.xlu0 %v230
        %v255 = vpop.xlane.xlu0 %254
        %256 = vadd.xlane.f32.xlu0 %v231
        %v257 = vpop.xlane.xlu0 %256
        %258 = vadd.xlane.f32.xlu0 %v232
        %v259 = vpop.xlane.xlu0 %258
        %260 = vadd.xlane.f32.xlu0 %v233
        %v261 = vpop.xlane.xlu0 %260
        %262 = vadd.xlane.f32.xlu0 %v234
        %v263 = vpop.xlane.xlu0 %262
        %264 = vadd.xlane.f32.xlu0 %v235
        %v265 = vpop.xlane.xlu0 %264
        %266 = vadd.xlane.f32.xlu0 %v236
        %v267 = vpop.xlane.xlu0 %266
        %268 = vadd.xlane.f32.xlu0 %v237
        %v269 = vpop.xlane.xlu0 %268
        %v270 = vadd.f32 %v239, 1e-24
        %v271 = vadd.f32 %v241, 1e-24
        %v272 = vadd.f32 %v243, 1e-24
        %v273 = vadd.f32 %v245, 1e-24
        %v274 = vadd.f32 %v247, 1e-24
        %v275 = vadd.f32 %v249, 1e-24
        %v276 = vadd.f32 %v251, 1e-24
        %v277 = vadd.f32 %v253, 1e-24
        %v278 = vadd.f32 %v255, 1e-24
        %v279 = vadd.f32 %v257, 1e-24
        %v280 = vadd.f32 %v259, 1e-24
        %v281 = vadd.f32 %v261, 1e-24
        %v282 = vadd.f32 %v263, 1e-24
        %v283 = vadd.f32 %v265, 1e-24
        %v284 = vadd.f32 %v267, 1e-24
        %v285 = vadd.f32 %v269, 1e-24
        %v286 = vrsqrt.pop %v270
        %v287 = vrsqrt.pop %v271
        %v288 = vrsqrt.pop %v272
        %v289 = vrsqrt.pop %v273
        %v290 = vrsqrt.pop %v274
        %v291 = vrsqrt.pop %v275
        %v292 = vrsqrt.pop %v276
        %v293 = vrsqrt.pop %v277
        %v294 = vrsqrt.pop %v278
        %v295 = vrsqrt.pop %v279
        %v296 = vrsqrt.pop %v280
        %v297 = vrsqrt.pop %v281
        %v298 = vrsqrt.pop %v282
        %v299 = vrsqrt.pop %v283
        %v300 = vrsqrt.pop %v284
        %v301 = vrsqrt.pop %v285
        %v302 = vmul.f32 %v200, %v221
        %v303 = vmul.f32 %v201, %v286
        %v304 = vmul.f32 %v202, %v287
        %v305 = vmul.f32 %v203, %v288
        %v306 = vmul.f32 %v204, %v289
        %v307 = vmul.f32 %v205, %v290
        %v308 = vmul.f32 %v206, %v291
        %v309 = vmul.f32 %v207, %v292
        %v310 = vmul.f32 %v208, %v293
        %v311 = vmul.f32 %v209, %v294
        %v312 = vmul.f32 %v210, %v295
        %v313 = vmul.f32 %v211, %v296
        %v314 = vmul.f32 %v212, %v297
        %v315 = vmul.f32 %v213, %v298
        %v316 = vmul.f32 %v214, %v299
        %v317 = vmul.f32 %v215, %v300
        %v318 = vmul.f32 %v216, %v301
        %319 = vmatprep.subr.mxu0 0.0
        %320 = vmatpush1.xpose.msra.mxu0 %v303
        %321 = vmatprep.subr.mxu0 0.0
        %322 = vmatpush1.xpose.msra.mxu0 %v304
        %323 = vmatprep.subr.mxu0 0.0
        %324 = vmatpush1.xpose.msra.mxu0 %v305
        %325 = vmatprep.subr.mxu0 0.0
        %326 = vmatpush1.xpose.msra.mxu0 %v306
        %327 = vmatprep.subr.mxu0 0.0
        %328 = vmatpush1.xpose.msra.mxu0 %v307
        %329 = vmatprep.subr.mxu0 0.0
        %330 = vmatpush1.xpose.msra.mxu0 %v308
        %331 = vmatprep.subr.mxu0 0.0
        %332 = vmatpush1.xpose.msra.mxu0 %v309
        %333 = vmatprep.subr.mxu0 0.0
        %334 = vmatpush1.xpose.msra.mxu0 %v310
        %335 = vmatprep.subr.mxu0 0.0
        %336 = vmatpush1.xpose.msra.mxu0 %v311
        %337 = vmatprep.subr.mxu0 0.0
        %338 = vmatpush1.xpose.msra.mxu0 %v312
        %339 = vmatprep.subr.mxu0 0.0
        %340 = vmatpush1.xpose.msra.mxu0 %v313
        %341 = vmatprep.subr.mxu0 0.0
        %342 = vmatpush1.xpose.msra.mxu0 %v314
        %343 = vmatprep.subr.mxu0 0.0
        %344 = vmatpush1.xpose.msra.mxu0 %v315
        %345 = vmatprep.subr.mxu0 0.0
        %346 = vmatpush1.xpose.msra.mxu0 %v316
        %347 = vmatprep.subr.mxu0 0.0
        %348 = vmatpush1.xpose.msra.mxu0 %v317
        %349 = vmatprep.subr.mxu0 0.0
        %350 = vmatpush1.xpose.msra.mxu0 %v318
        %351 = vmatprep.subr.mxu0 0.0
        %352 = vmatpush1.xpose.msra.mxu0 0.0
        %353 = vmatprep.subr.mxu0 0.0
        %354 = vmatpush1.xpose.msra.mxu0 0.0
        %355 = vmatprep.subr.mxu0 0.0
        %356 = vmatpush1.xpose.msra.mxu0 0.0
        %357 = vmatprep.subr.mxu0 0.0
        %358 = vmatpush1.xpose.msra.mxu0 0.0
        %359 = vmatprep.subr.mxu0 0.0
        %360 = vmatpush1.xpose.msra.mxu0 0.0
        %361 = vmatprep.subr.mxu0 0.0
        %362 = vmatpush1.xpose.msra.mxu0 0.0
        %363 = vmatprep.subr.mxu0 0.0
        %364 = vmatpush1.xpose.msra.mxu0 0.0
        %365 = vmatprep.subr.mxu0 0.0
        %366 = vmatpush1.xpose.msra.mxu0 0.0
        %367 = vmatprep.subr.mxu0 0.0
        %368 = vmatpush1.xpose.msra.mxu0 0.0
        %369 = vmatprep.subr.mxu0 0.0
        %370 = vmatpush1.xpose.msra.mxu0 0.0
        %371 = vmatprep.subr.mxu0 0.0
        %372 = vmatpush1.xpose.msra.mxu0 0.0
        %373 = vmatprep.subr.mxu0 0.0
        %374 = vmatpush1.xpose.msra.mxu0 0.0
        %375 = vmatprep.subr.mxu0 0.0
        %376 = vmatpush1.xpose.msra.mxu0 0.0
        %377 = vmatprep.subr.mxu0 0.0
        %378 = vmatpush1.xpose.msra.mxu0 0.0
        %379 = vmatprep.subr.mxu0 0.0
        %380 = vmatpush1.xpose.msra.mxu0 0.0
        %381 = vmatprep.subr.mxu0 0.0
        %382 = vmatpush1.xpose.msra.mxu0 0.0
        %383 = vmatprep.mubr.f32.mxu0 0.0
        %384 = vmatmul.mubr.f32.gmra.mrb[0].mxu0 %v302
        %v385 = vpop.f32.mrb[0].mxu0
        %v386 = vadd.f32 0.0, %v385
        %v387 = vpop.f32.mrb[0].mxu0
        %388 = vdwg.mxu0
        %v389 = vsub.f32 0.0, %v386
        %v390 = vadd.f32 %v389, 1.0
        %v391 = vadd.f32 %v390, 0.25
        %v392 = vmax.f32 %v391, 0.0
        %v393 = vadd.f32 %v386, 0.25
        %v394 = vmax.f32 %v393, 0.0
        %v395 = vmul.f32 %v392, 64.0
        %v396 = vsub.f32 %v386, 0.75
        %v397 = vmul.f32 %v395, %v396
        %v398 = vmul.f32 %v394, 64.0
        %v399 = vsub.f32 %v386, 0.25
        %v400 = vmul.f32 %v398, %v399
        %v401 = vlaneseq
        %v402 = vand.u32 %v401, 127
        %s403 = smul.u32 %s20, 128
        %v404 = vstv %s403
        %v405 = vadd.s32 %v402, %v404
        %v406 = vld [vmem:[%s2] sm:$0xff]
        %407 = vset.pattern.permute.xlu0 0
        %408 = vperm.xlu0 %407, %v406
        %v409 = vpop.permute.xlu0 %408
        %vm410 = vcmp.eq.s32.totalorder %v405, %v409
        %v411 = vsel %vm410, %v397, %v400
        %412 = vst [vmem:[%s194] sm:$0xff] %v411
        %s413 = sand.u32 %s96, 1
        %s414 = scalar_lea.sflag [#allocation4], %s413
        %s415 = sand.u32 %s96, 1
        %s416 = smul.addr %s415, 8
        %s417 = scalar_lea.vmem [#allocation5], %s416
        // Predicated region
        $region37: #{tpu_custom_call.1} parent=31 // pred_check
          %p418 = pneg %p106
        $region38: #{tpu_custom_call.1} parent=31 // pred_check_branch
          %420 = sbr.rel (%p418) target = $region40
        $region39: #{tpu_custom_call.1} parent=31 // pred_region
          %s422 = ssub.s32 128, 128
          %423 = vsyncadd %s414, %s422
          %s424 = smul.addr %s20, 128
          %s425 = scalar_lea.hbm %s3, %s424
          %s427 = sshll.u32 %s417, 4
          %s428 = int_to_ptr.vmem [resolvable:$true] %s427
          %430 = dma.vmem_to_hbm [thread:$0]  %s428, 128, %s425, %s414
        $region40: #{tpu_custom_call.1} parent=31 // pred_fallthru
          _
      $region32: #{tpu_custom_call.1} parent=5 // pred_fallthru
        _
      %p431 = scmp.le.s32.totalorder 2, %s15
      // Predicated region
      $region41: #{tpu_custom_call.1} parent=5 // pred_check
        %p432 = pneg %p431
      $region42: #{tpu_custom_call.1} parent=5 // pred_check_branch
        %434 = sbr.rel (%p432) target = $region44
      $region43: #{tpu_custom_call.1} parent=5 // pred_region
        %s435 = ssub.s32 %s15, 2
        // Predicated region
        $region45: #{tpu_custom_call.1} parent=43 // pred_check
          %p436 = pneg %p112
        $region46: #{tpu_custom_call.1} parent=43 // pred_check_branch
          %438 = sbr.rel (%p436) target = $region48
        $region47: #{tpu_custom_call.1} parent=43 // pred_region
          %s439 = sand.u32 %s97, 1
          %s440 = scalar_lea.sflag [#allocation4], %s439
          %s441 = sand.u32 %s97, 1
          %s442 = smul.addr %s441, 8
          %s443 = scalar_lea.vmem [#allocation5], %s442
          %444 = dma.done %s440, 128
        $region48: #{tpu_custom_call.1} parent=43 // pred_fallthru
          _
      $region44: #{tpu_custom_call.1} parent=5 // pred_fallthru
        _
    $region6: #{tpu_custom_call.1} parent=1 // loop_footer
      %s19 = sadd.s32 1, %s15
    $region7: #{tpu_custom_call.1} parent=1 // loop_footer_branch
      %14 = sbr.rel target = $region3
    $region8: #{tpu_custom_call.1} parent=1 // loop_exit
      _
    %445 = vsyncpa [#allocation3], 1
    %s446 = scalar_lea.sflag [#allocation3], 1
    %447 = vsyncpa %s446, 1
    %448 = vsyncpa [#allocation4], 1
    %s449 = scalar_lea.sflag [#allocation4], 1
    %450 = vsyncpa %s449, 1

</llo_original>
